<compile_context>
chip_gen: v7x
topology: tpu7x:2x2x1
jax: 0.10.0
libtpu: 0.0.40
codegen_flags: <defaults>
</compile_context>

<pallas_src>
import functools

import jax
import jax.numpy as jnp
from jax import lax
from jax.experimental import pallas as pl
from jax.experimental.pallas import tpu as pltpu


def _round_up(x, m):
    return ((x + m - 1) // m) * m


def _cdiv(a, b):
    return (a + b - 1) // b


def _sublane_multiple(dtype):
    # Native second-minor tile: 8 rows for 4-byte dtypes, 16 for 2-byte, 32 for 1-byte.
    itemsize = jnp.dtype(dtype).itemsize
    if itemsize >= 4:
        return 8
    if itemsize == 2:
        return 16
    return 32


def _tpu_vmem_budget_bytes():
    """Per-generation VMEM budget: ~80% of per-core VMEM, clamped to [32, 100] MiB."""
    cap = 64 * 1024 * 1024  # conservative fallback == v7x per-TensorCore VMEM
    try:
        info = pltpu.get_tpu_info()
        cap = int(getattr(info, "vmem_capacity_bytes", cap)) or cap
    except Exception:
        pass
    budget = (cap * 4) // 5
    return max(32 * 1024 * 1024, min(budget, 100 * 1024 * 1024))


def _linear_kernel_single_k(x_ref, w_ref, b_ref, o_ref, *, compute_dtype):
    # Whole reduction fits one tile: no accumulator scratch, no pl.when branches.
    x = x_ref[...].astype(compute_dtype)
    w = w_ref[...].astype(compute_dtype)
    acc = lax.dot_general(
        x, w, (((1,), (1,)), ((), ())), preferred_element_type=jnp.float32
    )
    o_ref[...] = (acc + b_ref[...].astype(jnp.float32)).astype(o_ref.dtype)


def _linear_kernel_multi_k(x_ref, w_ref, b_ref, o_ref, acc_ref, *, compute_dtype):
    # Grid: (M tiles, N tiles, K tiles); K is the reduction axis (last, "arbitrary").
    k = pl.program_id(2)

    @pl.when(k == 0)
    def _():
        # Fold the bias add into the f32 accumulator init (no separate epilogue add).
        acc_ref[...] = jnp.broadcast_to(
            b_ref[...].astype(jnp.float32), acc_ref.shape
        )

    x = x_ref[...].astype(compute_dtype)
    w = w_ref[...].astype(compute_dtype)
    acc_ref[...] += lax.dot_general(
        x, w, (((1,), (1,)), ((), ())), preferred_element_type=jnp.float32
    )

    @pl.when(k == pl.num_programs(2) - 1)
    def _():
        o_ref[...] = acc_ref[...].astype(o_ref.dtype)


def _pallas_linear(x2d, w, b, *, mxu_dtype=None):
    """y = x2d @ w.T + b (PyTorch nn.Linear convention) via a tiled Pallas matmul.

    x2d: (M, K); w: (D_out, D_in) == (N, K), used directly (no transpose); b: (N,).
    Returns (M, N) in x2d.dtype with f32 accumulation.
    """
    M, K = x2d.shape
    N, Kw = w.shape
    assert Kw == K, (Kw, K)

    out_dtype = x2d.dtype
    compute_dtype = (
        jnp.dtype(mxu_dtype) if mxu_dtype is not None else jnp.dtype(x2d.dtype)
    )

    in_b = jnp.dtype(x2d.dtype).itemsize
    w_b = jnp.dtype(w.dtype).itemsize
    out_b = jnp.dtype(out_dtype).itemsize
    sub = _sublane_multiple(x2d.dtype)

    budget = _tpu_vmem_budget_bytes()

    # Generation-dependent tile caps: bigger tiles on 128 MiB chips (v5e/v6e),
    # tighter on v7x's 64 MiB so double-buffering stays alive.
    if budget >= 80 * 1024 * 1024:
        tm_max, tn_max, tk_max = 2048, 1024, 1024
    else:
        tm_max, tn_max, tk_max = 1024, 512, 1024

    # --- K (reduction) tiling: single K tile whenever it fits (the common
    # TimeDistributed case).  Otherwise prefer a 128-aligned tile that divides
    # K exactly to avoid any padded copy; fall back to tk_max + zero-pad.
    if K <= tk_max:
        tk = K
    else:
        tk = tk_max
        for cand in range(tk_max, tk_max // 2 - 1, -128):
            if K % cand == 0:
                tk = cand
                break

    # --- N tiling: one full-width tile (block dim == array dim, always legal)
    # or 128-aligned tiles with a masked partial tile at the boundary.
    tn = N if N <= tn_max else tn_max

    # --- M tiling: balance the tile size so boundary waste is < one sublane
    # group instead of (tm - 1); never build a padded copy of x for M.
    if M <= sub:
        tm = M
    else:
        ntiles_m = _cdiv(M, tm_max)
        tm = _round_up(_cdiv(M, ntiles_m), sub)
        if tm > M:
            tm = M
    mi, nj = _cdiv(M, tm), _cdiv(N, tn)

    # v7x has 2 TensorCores: ensure at least one "parallel" axis has >= 2 tiles.
    if mi == 1 and nj == 1 and M >= 2 * sub:
        tm = _round_up(_cdiv(M, 2), sub)
        mi = _cdiv(M, tm)

    # --- Shrink-to-fit against the per-generation VMEM budget (double buffers
    # for x/w/out + bias + f32 accumulator when the reduction is tiled).
    def _vmem_bytes(tm_, tn_, tk_):
        buf = 2 * (tm_ * tk_ * in_b + tn_ * tk_ * w_b + tm_ * tn_ * out_b)
        buf += 2 * tn_ * 4
        if _cdiv(K, tk_) > 1:
            buf += tm_ * tn_ * 4
        return buf

    while _vmem_bytes(tm, tn, tk) > budget:
        if tm >= max(tn, tk) and tm > sub:
            tm = max(sub, ((tm // 2) // sub) * sub)
        elif tk >= tn and tk > 128:
            tk = max(128, ((tk // 2) // 128) * 128)
        elif tn > 128:
            tn = max(128, ((tn // 2) // 128) * 128)
        else:
            break

    mi, nj, kt = _cdiv(M, tm), _cdiv(N, tn), _cdiv(K, tk)

    # Zero-pad K only when the reduction is tiled and K is not a tile multiple
    # (M/N padding never materialized: partial boundary tiles are masked on store).
    Kp = tk * kt
    x_in, w_in = x2d, w
    if Kp != K:
        x_in = jnp.zeros((M, Kp), x2d.dtype).at[:, :K].set(x2d)
        w_in = jnp.zeros((N, Kp), w.dtype).at[:, :K].set(w)

    b2d = b.reshape(1, N).astype(jnp.float32)

    if kt == 1:
        kernel = functools.partial(
            _linear_kernel_single_k, compute_dtype=compute_dtype
        )
        grid = (mi, nj)
        in_specs = [
            pl.BlockSpec((tm, tk), lambda i, j: (i, 0)),   # x row tile
            pl.BlockSpec((tn, tk), lambda i, j: (j, 0)),   # weight tile (D_out, D_in)
            pl.BlockSpec((1, tn), lambda i, j: (0, j)),    # bias slice
        ]
        out_specs = pl.BlockSpec((tm, tn), lambda i, j: (i, j))
        scratch_shapes = []
        dim_sem = ("parallel", "parallel")
    else:
        kernel = functools.partial(
            _linear_kernel_multi_k, compute_dtype=compute_dtype
        )
        grid = (mi, nj, kt)
        in_specs = [
            pl.BlockSpec((tm, tk), lambda i, j, k: (i, k)),
            pl.BlockSpec((tn, tk), lambda i, j, k: (j, k)),
            pl.BlockSpec((1, tn), lambda i, j, k: (0, j)),
        ]
        out_specs = pl.BlockSpec((tm, tn), lambda i, j, k: (i, j))
        scratch_shapes = [pltpu.VMEM((tm, tn), jnp.float32)]
        dim_sem = ("parallel", "parallel", "arbitrary")

    return pl.pallas_call(
        kernel,
        out_shape=jax.ShapeDtypeStruct((M, N), out_dtype),
        grid_spec=pltpu.PrefetchScalarGridSpec(
            num_scalar_prefetch=0,
            grid=grid,
            in_specs=in_specs,
            out_specs=out_specs,
            scratch_shapes=scratch_shapes,
        ),
        compiler_params=pltpu.CompilerParams(
            dimension_semantics=dim_sem,
            vmem_limit_bytes=int(budget),
        ),
    )(x_in, w_in, b2d)


def time_distributed_linear(x, w, b, *, batch_first=False, mxu_dtype=None):
    """Replicates TimeDistributed(nn.Linear(D_in, D_out)).forward.

    w: (D_out, D_in) PyTorch-convention weight (used as-is, no transpose);
    b: (D_out,) bias.  mxu_dtype=jnp.bfloat16 optionally runs the MXU in bf16
    with f32 accumulation (v5e/v6e/v7x bf16-native MXUs) when accuracy allows.
    """
    if x.ndim <= 2:
        # PyTorch: return self.module(x)  (nn.Linear handles 1-D and 2-D inputs)
        x2d = x if x.ndim == 2 else x.reshape(1, -1)
        y = _pallas_linear(x2d, w, b, mxu_dtype=mxu_dtype)
        return y if x.ndim == 2 else y.reshape(-1)

    # x_reshape = x.contiguous().view(-1, x.size(-1))
    x2d = x.reshape(-1, x.shape[-1])
    y = _pallas_linear(x2d, w, b, mxu_dtype=mxu_dtype)

    d_out = y.shape[-1]
    if batch_first:
        return y.reshape(x.shape[0], -1, d_out)   # y.view(x.size(0), -1, y.size(-1))
    return y.reshape(-1, x.shape[1], d_out)       # y.view(-1, x.size(1), y.size(-1))


if __name__ == "__main__":
    key = jax.random.PRNGKey(0)
    k_x, k_w, k_b, k_x2, k_w2, k_b2 = jax.random.split(key, 6)

    # Small shapes: seq T=8, batch B=2, hidden D_in=32, D_out=32
    T, B, D_in, D_out = 8, 2, 32, 32

    x = jax.random.normal(k_x, (T, B, D_in), dtype=jnp.float32)
    w = jax.random.normal(k_w, (D_out, D_in), dtype=jnp.float32) * 0.1
    b = jax.random.normal(k_b, (D_out,), dtype=jnp.float32) * 0.1

    # --- seq-first input (batch_first=False is the module default)
    y = jax.block_until_ready(time_distributed_linear(x, w, b, batch_first=False))
    ref = (x.reshape(-1, D_in) @ w.T + b).reshape(-1, B, D_out)
    assert y.shape == (T, B, D_out), y.shape
    assert jnp.allclose(y, ref, atol=1e-5, rtol=1e-5)

    # --- batch_first=True with (B, T, D_in) input
    xb = jnp.transpose(x, (1, 0, 2))
    yb = jax.block_until_ready(time_distributed_linear(xb, w, b, batch_first=True))
    refb = (xb.reshape(-1, D_in) @ w.T + b).reshape(B, -1, D_out)
    assert yb.shape == (B, T, D_out), yb.shape
    assert jnp.allclose(yb, refb, atol=1e-5, rtol=1e-5)

    # --- non-divisible flattened M (T*B = 21) exercises masked boundary tiles
    T2, B2 = 7, 3
    x_odd = jax.random.normal(k_x, (T2, B2, D_in), dtype=jnp.float32)
    y_odd = jax.block_until_ready(time_distributed_linear(x_odd, w, b))
    ref_odd = (x_odd.reshape(-1, D_in) @ w.T + b).reshape(-1, B2, D_out)
    assert y_odd.shape == (T2, B2, D_out), y_odd.shape
    assert jnp.allclose(y_odd, ref_odd, atol=1e-5, rtol=1e-5)

    # --- 2-D input (len(x.size()) <= 2 path of the PyTorch module)
    x2d_in = jax.random.normal(k_x2, (10, D_in), dtype=jnp.float32)
    y2d = jax.block_until_ready(time_distributed_linear(x2d_in, w, b))
    ref2d = x2d_in @ w.T + b
    assert y2d.shape == (10, D_out), y2d.shape
    assert jnp.allclose(y2d, ref2d, atol=1e-5, rtol=1e-5)

    # --- tiled-reduction path (D_in > max K tile) with the f32 accumulator kernel
    D_in2, D_out2 = 1536, 64
    x_big = jax.random.normal(k_x2, (T, B, D_in2), dtype=jnp.float32)
    w_big = jax.random.normal(k_w2, (D_out2, D_in2), dtype=jnp.float32) * 0.05
    b_big = jax.random.normal(k_b2, (D_out2,), dtype=jnp.float32) * 0.1
    y_big = jax.block_until_ready(time_distributed_linear(x_big, w_big, b_big))
    ref_big = (x_big.reshape(-1, D_in2) @ w_big.T + b_big).reshape(-1, B, D_out2)
    assert y_big.shape == (T, B, D_out2), y_big.shape
    assert jnp.allclose(y_big, ref_big, atol=1e-3, rtol=1e-3)

    # --- optional bf16-MXU path (f32 accumulation), looser tolerance
    y_bf16 = jax.block_until_ready(
        time_distributed_linear(x, w, b, mxu_dtype=jnp.bfloat16)
    )
    assert y_bf16.shape == (T, B, D_out), y_bf16.shape
    assert jnp.allclose(y_bf16, ref, atol=5e-2, rtol=5e-2)

    print("KERNEL_OK")
</pallas_src>

<mosaic_0001>
module attributes {stable_mosaic.version = 11 : i64} {
  func.func @_linear_kernel_single_k(%arg0: i32, %arg1: i32, %arg2: memref<8x32xf32, #tpu.memory_space<vmem>>, %arg3: memref<32x32xf32, #tpu.memory_space<vmem>>, %arg4: memref<1x32xf32, #tpu.memory_space<vmem>>, %arg5: memref<8x32xf32, #tpu.memory_space<vmem>>) attributes {dimension_semantics = [#tpu.dimension_semantics<parallel>, #tpu.dimension_semantics<parallel>], iteration_bounds = array<i64: 2, 1>, scalar_prefetch = 0 : i64, scratch_operands = 0 : i64, tpu.core_type = #tpu.core_type<tc>, window_params = [{transform_indices = @transform_0, window_bounds = array<i64: 8, 32>}, {transform_indices = @transform_1, window_bounds = array<i64: 32, 32>}, {transform_indices = @transform_2, window_bounds = array<i64: 1, 32>}, {transform_indices = @transform_3, window_bounds = array<i64: 8, 32>}]} {
    %c0 = arith.constant 0 : index
    %c0_0 = arith.constant 0 : index
    %0 = vector.load %arg2[%c0, %c0_0] : memref<8x32xf32, #tpu.memory_space<vmem>>, vector<8x32xf32>
    %c0_1 = arith.constant 0 : index
    %c0_2 = arith.constant 0 : index
    %1 = vector.load %arg3[%c0_1, %c0_2] : memref<32x32xf32, #tpu.memory_space<vmem>>, vector<32x32xf32>
    %cst = arith.constant dense<0.000000e+00> : vector<8x32xf32>
    %2 = tpu.matmul %0, %1, %cst {dimension_numbers = #tpu.dot_dimension_numbers<[1], [1], [0], [0], [0, 0, 1, 0], [], []>} : vector<8x32xf32>, vector<32x32xf32>, vector<8x32xf32> -> vector<8x32xf32>
    %c0_3 = arith.constant 0 : index
    %c0_4 = arith.constant 0 : index
    %3 = vector.load %arg4[%c0_3, %c0_4] : memref<1x32xf32, #tpu.memory_space<vmem>>, vector<1x32xf32>
    %4 = vector.broadcast %3 : vector<1x32xf32> to vector<8x32xf32>
    %5 = arith.addf %2, %4 : vector<8x32xf32>
    %c0_5 = arith.constant 0 : index
    %c0_6 = arith.constant 0 : index
    %6 = vector.load %arg5[%c0_5, %c0_6] : memref<8x32xf32, #tpu.memory_space<vmem>>, vector<8x32xf32>
    tpu.vector_store %arg5[%c0_5, %c0_6], %5 {strides = array<i32>} : memref<8x32xf32, #tpu.memory_space<vmem>>, vector<8x32xf32>,
    return
  }
  func.func @transform_0(%arg0: i32, %arg1: i32) -> (i32, i32) {
    %c0_i32 = arith.constant 0 : i32
    %c0_i32_0 = arith.constant 0 : i32
    return %arg0, %c0_i32 : i32, i32
  }
  func.func @transform_1(%arg0: i32, %arg1: i32) -> (i32, i32) {
    %c0_i32 = arith.constant 0 : i32
    %c0_i32_0 = arith.constant 0 : i32
    return %arg1, %c0_i32 : i32, i32
  }
  func.func @transform_2(%arg0: i32, %arg1: i32) -> (i32, i32) {
    %c0_i32 = arith.constant 0 : i32
    %c0_i32_0 = arith.constant 0 : i32
    return %c0_i32, %arg1 : i32, i32
  }
  func.func @transform_3(%arg0: i32, %arg1: i32) -> (i32, i32) {
    %c0_i32 = arith.constant 0 : i32
    return %arg0, %arg1 : i32, i32
  }
}

</mosaic_0001>

<llo_original>
// kernel: tpu_custom_call.1
$region0: #{tpu_custom_call.1}
  #allocation0 [shape = 'u32[]', space=smem, size = 0x4, offset = 0x4, fixed_abs, tag = 'smem constant byte address 0x4 - core index']
  #allocation1 [shape = 'u32[144,128]{1,0:T(1,128)}', space=vmem, size = 0x12000, scoped, tag = 'internal scratch']
  %s0 = inlined_call_operand.hbm [shape: f32[16,32], index: 0, kind: input, shape index: {}]
  %s1 = inlined_call_operand.hbm [shape: f32[32,32], index: 1, kind: input, shape index: {}]
  %s2 = inlined_call_operand.vmem [shape: f32[1,32], index: 2, kind: input, shape index: {}]
  %s3 = inlined_call_operand.hbm [shape: f32[16,32], index: 3, kind: output, shape index: {}]
  %s4 = sld [smem:[#allocation0]]
  $region53: #{tpu_custom_call.1} parent=0
    _
  %s6 = ssub.s32 1, %s4
  %s7 = scalar_select 0, %s6, %s4
  $region1: #{tpu_custom_call.1} parent=0
    #allocation2 [shape = 'u8[8192]{0}', space=vmem, size = 0x2000, scoped, tag = 'input window, operand 0']
    #allocation3 [shape = 's32[2]{0}', space=sflag, size = 0x8, scoped, tag = 'scoped memory for tpu_custom_call.1']
    #allocation4 [shape = 's32[2]{0}', space=sflag, size = 0x8, scoped, tag = 'scoped memory for tpu_custom_call.1']
    #allocation5 [shape = 'u8[16384]{0}', space=vmem, size = 0x4000, scoped, tag = 'input window, operand 1, single buffered']
    #allocation6 [shape = 's32[1]{0}', space=sflag, size = 0x4, scoped, tag = 'scoped memory for tpu_custom_call.1']
    #allocation7 [shape = 'u8[8192]{0}', space=vmem, size = 0x2000, scoped, tag = 'output window, operand 0']
    %8 = vsyncpa [#allocation3], 0
    %s9 = scalar_lea.sflag [#allocation3], 1
    %10 = vsyncpa %s9, 0
    %11 = vsyncpa [#allocation6], 0
    %12 = vsyncpa [#allocation4], 0
    %s13 = scalar_lea.sflag [#allocation4], 1
    %14 = vsyncpa %s13, 0
    loop: start=0, step=1, limit=4
    $region2: #{tpu_custom_call.1} parent=1 // loop_pre_header
      _
    $region3: #{tpu_custom_call.1} parent=1 // loop_header
      %s16 = sphi 0, %s20
      %p17 = scmp.ge.s32.totalorder %s16, 4
      %s23 = sphi 0, %s35
      %s24 = sphi 0, %s31
      %s25 = sphi 0, %s23
      %s26 = sphi 0, %s24
      %s27 = sphi 0, %s25
      %s28 = sphi 0, %s26
      %s38 = sphi 0, %s40
      %s41 = sphi 0, %s38
      %s42 = sphi 0, %s41
      %s58 = sphi 0, %s42
      %s64 = sphi 0, %s66
      %s67 = sphi 0, %s64
      %s68 = sphi 0, %s67
      %s84 = sphi 0, %s68
      %s90 = sphi 0, %s92
      %s93 = sphi 0, %s90
      %s94 = sphi 0, %s93
      %s110 = sphi 0, %s94
      %s118 = sphi 0, %s120
      %s121 = sphi 0, %s118
      %s122 = sphi 0, %s121
      %s138 = sphi 0, %s122
    $region4: #{tpu_custom_call.1} parent=1 // loop_header_branch
      %19 = sbr.rel (%p17) target = $region8
    $region5: #{tpu_custom_call.1} parent=1 // loop_body
      %s21 = ssub.s32 %s16, 1
      %s22 = ssub.s32 %s16, 2
      %s29 = sadd.s32 1, %s24
      %p30 = scmp.ge.s32.totalorder %s29, 1
      %s31 = scalar_select %p30, 0, %s29
      %s32 = sadd.s32 1, %s23
      %s33 = scalar_select %p30, %s32, %s23
      %p34 = scmp.ge.s32.totalorder %s33, 2
      %s35 = scalar_select %p34, 0, %s33
      %s36 = ssub.s32 %s23, %s35
      %p37 = scmp.eq.s32.totalorder %s36, 0
      %s39 = sadd.s32 %s38, 1
      %s40 = scalar_select %p37, %s38, %s39
      %p43 = pneg %p37
      %p44 = scmp.eq.s32.totalorder %s16, 1
      %p45 = por %p43, %p44
      %p46 = scmp.ne.s32.totalorder %s38, %s41
      %p47 = scmp.eq.s32.totalorder %s16, 0
      %p48 = por %p46, %p47
      %p49 = scmp.ne.s32.totalorder %s38, %s41
      %p50 = scmp.eq.s32.totalorder %s21, 1
      %p51 = por %p49, %p50
      %p52 = scmp.ne.s32.totalorder %s41, %s42
      %p53 = scmp.eq.s32.totalorder %s21, 0
      %p54 = por %p52, %p53
      %p55 = scmp.ne.s32.totalorder %s41, %s42
      %p56 = scmp.eq.s32.totalorder %s22, 1
      %p57 = por %p55, %p56
      %p59 = scmp.ne.s32.totalorder %s42, %s58
      %p60 = scmp.eq.s32.totalorder %s22, 0
      %p61 = por %p59, %p60
      %s62 = ssub.s32 %s24, %s31
      %p63 = scmp.eq.s32.totalorder %s62, 0
      %s65 = sadd.s32 %s64, 1
      %s66 = scalar_select %p63, %s64, %s65
      %p69 = pneg %p63
      %p70 = scmp.eq.s32.totalorder %s16, 1
      %p71 = por %p69, %p70
      %p72 = scmp.ne.s32.totalorder %s64, %s67
      %p73 = scmp.eq.s32.totalorder %s16, 0
      %p74 = por %p72, %p73
      %p75 = scmp.ne.s32.totalorder %s64, %s67
      %p76 = scmp.eq.s32.totalorder %s21, 1
      %p77 = por %p75, %p76
      %p78 = scmp.ne.s32.totalorder %s67, %s68
      %p79 = scmp.eq.s32.totalorder %s21, 0
      %p80 = por %p78, %p79
      %p81 = scmp.ne.s32.totalorder %s67, %s68
      %p82 = scmp.eq.s32.totalorder %s22, 1
      %p83 = por %p81, %p82
      %p85 = scmp.ne.s32.totalorder %s68, %s84
      %p86 = scmp.eq.s32.totalorder %s22, 0
      %p87 = por %p85, %p86
      %s88 = ssub.s32 %s24, %s31
      %p89 = scmp.eq.s32.totalorder %s88, 0
      %s91 = sadd.s32 %s90, 1
      %s92 = scalar_select %p89, %s90, %s91
      %p95 = pneg %p89
      %p96 = scmp.eq.s32.totalorder %s16, 1
      %p97 = por %p95, %p96
      %p98 = scmp.ne.s32.totalorder %s90, %s93
      %p99 = scmp.eq.s32.totalorder %s16, 0
      %p100 = por %p98, %p99
      %p101 = scmp.ne.s32.totalorder %s90, %s93
      %p102 = scmp.eq.s32.totalorder %s21, 1
      %p103 = por %p101, %p102
      %p104 = scmp.ne.s32.totalorder %s93, %s94
      %p105 = scmp.eq.s32.totalorder %s21, 0
      %p106 = por %p104, %p105
      %p107 = scmp.ne.s32.totalorder %s93, %s94
      %p108 = scmp.eq.s32.totalorder %s22, 1
      %p109 = por %p107, %p108
      %p111 = scmp.ne.s32.totalorder %s94, %s110
      %p112 = scmp.eq.s32.totalorder %s22, 0
      %p113 = por %p111, %p112
      %s114 = ssub.s32 %s23, %s35
      %s115 = ssub.s32 %s24, %s31
      %s116 = sor.u32 %s114, %s115
      %p117 = scmp.eq.s32.totalorder %s116, 0
      %s119 = sadd.s32 %s118, 1
      %s120 = scalar_select %p117, %s118, %s119
      %p123 = pneg %p117
      %p124 = scmp.eq.s32.totalorder %s16, 1
      %p125 = por %p123, %p124
      %p126 = scmp.ne.s32.totalorder %s118, %s121
      %p127 = scmp.eq.s32.totalorder %s16, 0
      %p128 = por %p126, %p127
      %p129 = scmp.ne.s32.totalorder %s118, %s121
      %p130 = scmp.eq.s32.totalorder %s21, 1
      %p131 = por %p129, %p130
      %p132 = scmp.ne.s32.totalorder %s121, %s122
      %p133 = scmp.eq.s32.totalorder %s21, 0
      %p134 = por %p132, %p133
      %p135 = scmp.ne.s32.totalorder %s121, %s122
      %p136 = scmp.eq.s32.totalorder %s22, 1
      %p137 = por %p135, %p136
      %p139 = scmp.ne.s32.totalorder %s122, %s138
      %p140 = scmp.eq.s32.totalorder %s22, 0
      %p141 = por %p139, %p140
      %p142 = scmp.le.s32.totalorder 1, %s16
      %p143 = scmp.lt.s32.totalorder %s16, 3
      %p144 = pnand %p142, %p143
      %p145 = pneg %p144
      // Predicated region
      $region9: #{tpu_custom_call.1} parent=5 // pred_check
        _
      $region10: #{tpu_custom_call.1} parent=5 // pred_check_branch
        %147 = sbr.rel (%p144) target = $region12
      $region11: #{tpu_custom_call.1} parent=5 // pred_region
        %s148 = ssub.s32 %s16, 1
        // Predicated region
        $region13: #{tpu_custom_call.1} parent=11 // pred_check
          %p149 = pneg %p80
        $region14: #{tpu_custom_call.1} parent=11 // pred_check_branch
          %151 = sbr.rel (%p149) target = $region16
        $region15: #{tpu_custom_call.1} parent=11 // pred_region
          %s152 = smul.u32 4, %s26
          %s154 = ssub.s32 512, 512
          %155 = vsyncadd [#allocation6], %s154
          %s156 = smul.addr %s152, 128
          %s157 = scalar_lea.hbm %s1, %s156
          %s158 = sshll.u32 [#allocation5], 4
          %s159 = int_to_ptr.vmem [resolvable:$true] %s158
          %164 = dma.hbm_to_vmem [thread:$0]  %s157, 512, %s159, [#allocation6], 128, 128, 8
        $region16: #{tpu_custom_call.1} parent=11 // pred_fallthru
          _
        // Predicated region
        $region17: #{tpu_custom_call.1} parent=11 // pred_check
          %p165 = pneg %p106
        $region18: #{tpu_custom_call.1} parent=11 // pred_check_branch
          %167 = sbr.rel (%p165) target = $region20
        $region19: #{tpu_custom_call.1} parent=11 // pred_region
          %p168 = scmp.lt.s32.totalorder %s26, 0
          %s169 = scalar_select %p168, %s26, 0
          %s170 = scalar_lea.vmem %s2, %s169
        $region20: #{tpu_custom_call.1} parent=11 // pred_fallthru
          _
      $region12: #{tpu_custom_call.1} parent=5 // pred_fallthru
        _
      %p171 = scmp.lt.s32.totalorder %s16, 2
      // Predicated region
      $region21: #{tpu_custom_call.1} parent=5 // pred_check
        %p172 = pneg %p171
      $region22: #{tpu_custom_call.1} parent=5 // pred_check_branch
        %174 = sbr.rel (%p172) target = $region24
      $region23: #{tpu_custom_call.1} parent=5 // pred_region
        // Predicated region
        $region25: #{tpu_custom_call.1} parent=23 // pred_check
          %p175 = pneg %p48
        $region26: #{tpu_custom_call.1} parent=23 // pred_check_branch
          %177 = sbr.rel (%p175) target = $region28
        $region27: #{tpu_custom_call.1} parent=23 // pred_region
          %s178 = sand.u32 %s38, 1
          %s179 = scalar_lea.sflag [#allocation3], %s178
          %s180 = sand.u32 %s38, 1
          %s181 = smul.addr %s180, 8
          %s182 = scalar_lea.vmem [#allocation2], %s181
          %s184 = ssub.s32 128, 128
          %185 = vsyncadd %s179, %s184
          %s186 = smul.addr %s23, 128
          %s187 = scalar_lea.hbm %s0, %s186
          %s189 = sshll.u32 %s182, 4
          %s190 = int_to_ptr.vmem [resolvable:$true] %s189
          %192 = dma.hbm_to_vmem [thread:$0]  %s187, 128, %s190, %s179
        $region28: #{tpu_custom_call.1} parent=23 // pred_fallthru
          _
      $region24: #{tpu_custom_call.1} parent=5 // pred_fallthru
        _
      %p193 = scmp.le.s32.totalorder 1, %s16
      %p194 = scmp.lt.s32.totalorder %s16, 3
      %p195 = pnand %p193, %p194
      %p196 = pneg %p195
      // Predicated region
      $region29: #{tpu_custom_call.1} parent=5 // pred_check
        _
      $region30: #{tpu_custom_call.1} parent=5 // pred_check_branch
        %198 = sbr.rel (%p195) target = $region32
      $region31: #{tpu_custom_call.1} parent=5 // pred_region
        %s199 = ssub.s32 %s16, 1
        %s200 = sand.u32 %s41, 1
        %s201 = scalar_lea.sflag [#allocation3], %s200
        %s202 = sand.u32 %s41, 1
        %s203 = smul.addr %s202, 8
        %s204 = scalar_lea.vmem [#allocation2], %s203
        // Predicated region
        $region33: #{tpu_custom_call.1} parent=31 // pred_check
          %p205 = pneg %p54
        $region34: #{tpu_custom_call.1} parent=31 // pred_check_branch
          %207 = sbr.rel (%p205) target = $region36
        $region35: #{tpu_custom_call.1} parent=31 // pred_region
          %208 = dma.done %s201, 128
        $region36: #{tpu_custom_call.1} parent=31 // pred_fallthru
          _
        // Predicated region
        $region37: #{tpu_custom_call.1} parent=31 // pred_check
          %p209 = pneg %p80
        $region38: #{tpu_custom_call.1} parent=31 // pred_check_branch
          %211 = sbr.rel (%p209) target = $region40
        $region39: #{tpu_custom_call.1} parent=31 // pred_region
          %212 = dma.done [#allocation6], 512
        $region40: #{tpu_custom_call.1} parent=31 // pred_fallthru
          _
        %s213 = sand.u32 %s41, 1
        %s214 = scalar_lea.sflag [#allocation3], %s213
        %s215 = sand.u32 %s41, 1
        %s216 = smul.addr %s215, 8
        %s217 = scalar_lea.vmem [#allocation2], %s216
        %p218 = pneg %p54
        %p219 = pneg %p51
        %p220 = pneg %p80
        %p221 = pneg %p77
        %p222 = scmp.lt.s32.totalorder %s26, 0
        %s223 = scalar_select %p222, %s26, 0
        %s224 = scalar_lea.vmem %s2, %s223
        %p225 = pneg %p106
        %p226 = pneg %p103
        %p227 = pneg %p134
        %p228 = pneg %p131
        %s229 = sand.u32 %s121, 1
        %s230 = scalar_lea.sflag [#allocation4], %s229
        %s231 = sand.u32 %s121, 1
        %s232 = smul.addr %s231, 8
        %s233 = scalar_lea.vmem [#allocation7], %s232
        %s234 = smul.u32 4, %s26
        %p235 = scmp.lt.s32.totalorder %s26, 0
        %s236 = scalar_select %p235, %s26, 0
        %s237 = scalar_lea.vmem %s2, %s236
        %v238 = vld [vmem:[%s204] sm:$0xff]
        %v239 = vld [vmem:[#allocation5] sm:$0xff]
        %v240 = vld [vmem:[#allocation5 + $0x8] sm:$0xff]
        %v241 = vld [vmem:[#allocation5 + $0x10] sm:$0xff]
        %v242 = vld [vmem:[#allocation5 + $0x18] sm:$0xff]
        %v243 = vld [vmem:[%s237] sm:$0x1]
        %v245 = vlaneseq
        %v246 = vshrl.u32 %v245, 7
        %v247 = vsub.s32 0, %v246
        %v248 = vrot.slane %v243, %v247
        %vm250 = vcmask 261120
        %v252 = vsel %vm250, %v238, 0
        %v255 = vsel %vm250, %v239, 0
        %v258 = vsel %vm250, %v240, 0
        %v261 = vsel %vm250, %v241, 0
        %v264 = vsel %vm250, %v242, 0
        %266 = vmatprep.subr.mxu0 0.0
        %267 = vmatpush1.xpose.msra.mxu0 %v255
        %268 = vmatprep.subr.mxu0 0.0
        %269 = vmatpush1.xpose.msra.mxu0 %v258
        %270 = vmatprep.subr.mxu0 0.0
        %271 = vmatpush1.xpose.msra.mxu0 %v261
        %272 = vmatprep.subr.mxu0 0.0
        %273 = vmatpush1.xpose.msra.mxu0 %v264
        %274 = vmatprep.subr.mxu0 0.0
        %275 = vmatpush1.xpose.msra.mxu0 0.0
        %276 = vmatprep.subr.mxu0 0.0
        %277 = vmatpush1.xpose.msra.mxu0 0.0
        %278 = vmatprep.subr.mxu0 0.0
        %279 = vmatpush1.xpose.msra.mxu0 0.0
        %280 = vmatprep.subr.mxu0 0.0
        %281 = vmatpush1.xpose.msra.mxu0 0.0
        %282 = vmatprep.subr.mxu0 0.0
        %283 = vmatpush1.xpose.msra.mxu0 0.0
        %284 = vmatprep.subr.mxu0 0.0
        %285 = vmatpush1.xpose.msra.mxu0 0.0
        %286 = vmatprep.subr.mxu0 0.0
        %287 = vmatpush1.xpose.msra.mxu0 0.0
        %288 = vmatprep.subr.mxu0 0.0
        %289 = vmatpush1.xpose.msra.mxu0 0.0
        %290 = vmatprep.subr.mxu0 0.0
        %291 = vmatpush1.xpose.msra.mxu0 0.0
        %292 = vmatprep.subr.mxu0 0.0
        %293 = vmatpush1.xpose.msra.mxu0 0.0
        %294 = vmatprep.subr.mxu0 0.0
        %295 = vmatpush1.xpose.msra.mxu0 0.0
        %296 = vmatprep.subr.mxu0 0.0
        %297 = vmatpush1.xpose.msra.mxu0 0.0
        %298 = vmatprep.subr.mxu0 0.0
        %299 = vmatpush1.xpose.msra.mxu0 0.0
        %300 = vmatprep.subr.mxu0 0.0
        %301 = vmatpush1.xpose.msra.mxu0 0.0
        %302 = vmatprep.subr.mxu0 0.0
        %303 = vmatpush1.xpose.msra.mxu0 0.0
        %304 = vmatprep.subr.mxu0 0.0
        %305 = vmatpush1.xpose.msra.mxu0 0.0
        %306 = vmatprep.subr.mxu0 0.0
        %307 = vmatpush1.xpose.msra.mxu0 0.0
        %308 = vmatprep.subr.mxu0 0.0
        %309 = vmatpush1.xpose.msra.mxu0 0.0
        %310 = vmatprep.subr.mxu0 0.0
        %311 = vmatpush1.xpose.msra.mxu0 0.0
        %312 = vmatprep.subr.mxu0 0.0
        %313 = vmatpush1.xpose.msra.mxu0 0.0
        %314 = vmatprep.subr.mxu0 0.0
        %315 = vmatpush1.xpose.msra.mxu0 0.0
        %316 = vmatprep.subr.mxu0 0.0
        %317 = vmatpush1.xpose.msra.mxu0 0.0
        %318 = vmatprep.subr.mxu0 0.0
        %319 = vmatpush1.xpose.msra.mxu0 0.0
        %320 = vmatprep.subr.mxu0 0.0
        %321 = vmatpush1.xpose.msra.mxu0 0.0
        %322 = vmatprep.subr.mxu0 0.0
        %323 = vmatpush1.xpose.msra.mxu0 0.0
        %324 = vmatprep.subr.mxu0 0.0
        %325 = vmatpush1.xpose.msra.mxu0 0.0
        %326 = vmatprep.subr.mxu0 0.0
        %327 = vmatpush1.xpose.msra.mxu0 0.0
        %328 = vmatprep.subr.mxu0 0.0
        %329 = vmatpush1.xpose.msra.mxu0 0.0
        %330 = vmatprep.mubr.f32.mxu0 0.0
        %331 = vmatmul.mubr.f32.gmra.mrb[0].mxu0 %v252
        %v332 = vpop.f32.mrb[0].mxu0
        %v333 = vadd.f32 %v248, %v332
        %v334 = vpop.f32.mrb[0].mxu0
        %335 = vdwg.mxu0
        %336 = vst.msk [vmem:[%s233] sm:$0xff] %vm250, %v333
        %s337 = sand.u32 %s121, 1
        %s338 = scalar_lea.sflag [#allocation4], %s337
        %s339 = sand.u32 %s121, 1
        %s340 = smul.addr %s339, 8
        %s341 = scalar_lea.vmem [#allocation7], %s340
        // Predicated region
        $region41: #{tpu_custom_call.1} parent=31 // pred_check
          %p342 = pneg %p131
        $region42: #{tpu_custom_call.1} parent=31 // pred_check_branch
          %344 = sbr.rel (%p342) target = $region44
        $region43: #{tpu_custom_call.1} parent=31 // pred_region
          %s346 = ssub.s32 128, 128
          %347 = vsyncadd %s338, %s346
          %s348 = sadd.s32 %s26, %s25
          %s349 = smul.addr %s348, 128
          %s350 = scalar_lea.hbm %s3, %s349
          %s352 = sshll.u32 %s341, 4
          %s353 = int_to_ptr.vmem [resolvable:$true] %s352
          %355 = dma.vmem_to_hbm [thread:$0]  %s353, 128, %s350, %s338
        $region44: #{tpu_custom_call.1} parent=31 // pred_fallthru
          _
      $region32: #{tpu_custom_call.1} parent=5 // pred_fallthru
        _
      %p356 = scmp.le.s32.totalorder 2, %s16
      // Predicated region
      $region45: #{tpu_custom_call.1} parent=5 // pred_check
        %p357 = pneg %p356
      $region46: #{tpu_custom_call.1} parent=5 // pred_check_branch
        %359 = sbr.rel (%p357) target = $region48
      $region47: #{tpu_custom_call.1} parent=5 // pred_region
        %s360 = ssub.s32 %s16, 2
        // Predicated region
        $region49: #{tpu_custom_call.1} parent=47 // pred_check
          %p361 = pneg %p137
        $region50: #{tpu_custom_call.1} parent=47 // pred_check_branch
          %363 = sbr.rel (%p361) target = $region52
        $region51: #{tpu_custom_call.1} parent=47 // pred_region
          %s364 = sand.u32 %s122, 1
          %s365 = scalar_lea.sflag [#allocation4], %s364
          %s366 = sand.u32 %s122, 1
          %s367 = smul.addr %s366, 8
          %s368 = scalar_lea.vmem [#allocation7], %s367
          %369 = dma.done %s365, 128
        $region52: #{tpu_custom_call.1} parent=47 // pred_fallthru
          _
      $region48: #{tpu_custom_call.1} parent=5 // pred_fallthru
        _
    $region6: #{tpu_custom_call.1} parent=1 // loop_footer
      %s20 = sadd.s32 1, %s16
    $region7: #{tpu_custom_call.1} parent=1 // loop_footer_branch
      %15 = sbr.rel target = $region3
    $region8: #{tpu_custom_call.1} parent=1 // loop_exit
      _
    %370 = vsyncpa [#allocation3], 1
    %s371 = scalar_lea.sflag [#allocation3], 1
    %372 = vsyncpa %s371, 1
    %373 = vsyncpa [#allocation6], 1
    %374 = vsyncpa [#allocation4], 1
    %s375 = scalar_lea.sflag [#allocation4], 1
    %376 = vsyncpa %s375, 1

</llo_original>
